<compile_context>
chip_gen: v7x
topology: tpu7x:2x2x1
jax: 0.10.0
libtpu: 0.0.40
codegen_flags: <defaults>
</compile_context>

<pallas_src>
import functools

import jax
import jax.numpy as jnp
from jax.experimental import pallas as pl
from jax.experimental.pallas import tpu as pltpu


def _sigmoid(z):
    # Exact, numerically stable sigmoid in f32.  Nothing here is VPU/EUP bound
    # (the kernel is HBM / step-overhead bound), so the exact form is free.
    e = jnp.exp(-jnp.abs(z))
    return jnp.where(z >= 0, 1.0 / (1.0 + e), e / (1.0 + e))


def mlp_kernel(x_ref,
               w1_ref, b1_ref,
               w2_ref, b2_ref,
               w3_ref, b3_ref,
               w4_ref, b4_ref,
               o_ref):
    """One batch tile.  x_ref: [TB, din] (native layout); o_ref: [1, TB]."""
    x = x_ref[...]

    # fc1: W1 [20, din] contracted against x's last axis -> [20, TB].
    # Batch lives on the lane axis from here on, so every later op and the
    # final store is lane-dense; the implicit x transpose uses the idle XLU.
    h = jax.lax.dot_general(
        w1_ref[...], x,
        dimension_numbers=(((1,), (1,)), ((), ())),
        preferred_element_type=jnp.float32) + b1_ref[...]
    h = _sigmoid(h)

    def layer(w_ref, b_ref, h):
        # W [out, in] @ h [in, TB] -> [out, TB]; bias [out, 1] broadcasts on lanes.
        return jnp.dot(w_ref[...], h,
                       preferred_element_type=jnp.float32) + b_ref[...]

    h = _sigmoid(layer(w2_ref, b2_ref, h))
    h = _sigmoid(layer(w3_ref, b3_ref, h))
    h = layer(w4_ref, b4_ref, h)                   # fc4, no activation
    o_ref[...] = h.astype(o_ref.dtype)             # [1, TB] lane-dense store


def _pick_batch_tile(B, din, itemsize, *, tile_bytes, min_steps=4):
    """Rows of x per tile: ~tile_bytes of x, lane-aligned, >= min_steps grid steps."""
    row_bytes = max(din * itemsize, 1)
    tb = max(128, (tile_bytes // row_bytes) // 128 * 128)
    if B >= min_steps * 128:
        # Keep several grid steps so v7x can shard the batch axis across its two
        # TensorCores and each core still has steps left to double-buffer.
        tb = min(tb, max(128, (B // min_steps) // 128 * 128))
    if B <= tb:
        return B           # single tile covering the whole (small) batch
    return tb


def neural_net_forward(x, params, *, tile_bytes=2 << 20):
    """x: [B, input_size].  params: name -> (W [out, in], b [out, 1])."""
    B, din = x.shape
    (w1, b1), (w2, b2), (w3, b3), (w4, b4) = (params["fc1"], params["fc2"],
                                              params["fc3"], params["fc4"])
    dout = w4.shape[0]                              # = 1

    TB = _pick_batch_tile(B, din, x.dtype.itemsize, tile_bytes=tile_bytes)
    grid = (pl.cdiv(B, TB),)                        # ragged tail handled by Pallas masking

    # Tiny weights / biases stay VMEM-resident across all grid steps (index (0,0)).
    # pl.Buffered(1) on them would drop the redundant second buffer, but the VMEM
    # saving is negligible at these widths.
    weight_spec = lambda a: pl.BlockSpec(a.shape, lambda i: (0, 0))

    # VMEM budget: 2x double-buffered x tile + ~6 live [20, TB] intermediates
    # + double-buffered [1, TB] output (+ slack for the weights).
    est = TB * 4 * (2 * din + 6 * 20 + 2 * dout) + (1 << 20)
    vmem_limit = int(min(max(2 * est, 32 << 20), 48 << 20))   # stays under v7x's 64 MiB

    out_t = pl.pallas_call(
        mlp_kernel,
        out_shape=jax.ShapeDtypeStruct((dout, B), jnp.float32),
        grid=grid,
        in_specs=[
            # Native-layout x tile: fully contiguous HBM read (din is innermost).
            pl.BlockSpec((TB, din), lambda i: (i, 0)),
            weight_spec(w1), weight_spec(b1),
            weight_spec(w2), weight_spec(b2),
            weight_spec(w3), weight_spec(b3),
            weight_spec(w4), weight_spec(b4),
        ],
        out_specs=pl.BlockSpec((dout, TB), lambda i: (0, i)),
        compiler_params=pltpu.CompilerParams(
            dimension_semantics=("parallel",),      # dual-TC sharding on v7x
            vmem_limit_bytes=vmem_limit),
    )(x, w1, b1, w2, b2, w3, b3, w4, b4)

    # Back to PyTorch layout [B, 1]; a [1, B] transpose moves B*4 bytes, nothing
    # like the old full-x transpose+pad.
    return jnp.transpose(out_t)


def init_params(key, input_size):
    """PyTorch nn.Linear convention: W [out, in], U(-1/sqrt(in), 1/sqrt(in)).
    Biases stored as [out, 1] so they broadcast over the lane (batch) axis."""
    dims = [(input_size, 20), (20, 20), (20, 20), (20, 1)]
    names = ["fc1", "fc2", "fc3", "fc4"]
    params = {}
    for name, (din, dout) in zip(names, dims):
        key, kw, kb = jax.random.split(key, 3)
        bound = 1.0 / float(din) ** 0.5
        w = jax.random.uniform(kw, (dout, din), jnp.float32, -bound, bound)
        b = jax.random.uniform(kb, (dout, 1), jnp.float32, -bound, bound)
        params[name] = (w, b)
    return params


def ref_forward(x, params):
    hp = jax.lax.Precision.HIGHEST

    def lin(h, name):
        w, b = params[name]
        return jnp.dot(h, w.T.astype(jnp.float32), precision=hp) + b[:, 0]

    h = jax.nn.sigmoid(lin(x.astype(jnp.float32), "fc1"))
    h = jax.nn.sigmoid(lin(h, "fc2"))
    h = jax.nn.sigmoid(lin(h, "fc3"))
    return lin(h, "fc4")


if __name__ == "__main__":
    key = jax.random.PRNGKey(0)
    key, kx = jax.random.split(key)

    input_size = 32
    batch = 8
    x = jax.random.normal(kx, (batch, input_size), jnp.float32)
    params = init_params(key, input_size)

    fwd = jax.jit(neural_net_forward, static_argnames=("tile_bytes",))

    # 1) Small batch, single grid step.
    out = jax.block_until_ready(fwd(x, params))
    ref = ref_forward(x, params)
    assert out.shape == (batch, 1), out.shape
    assert jnp.allclose(out, ref, atol=2e-3, rtol=2e-3), float(jnp.max(jnp.abs(out - ref)))

    # 2) Larger batch with a small tile budget: multi-step pipelined grid + ragged tail.
    key, kx2 = jax.random.split(key)
    x2 = jax.random.normal(kx2, (1219, input_size), jnp.float32)
    out2 = jax.block_until_ready(fwd(x2, params, tile_bytes=64 << 10))
    ref2 = ref_forward(x2, params)
    assert out2.shape == (1219, 1), out2.shape
    assert jnp.allclose(out2, ref2, atol=2e-3, rtol=2e-3), float(jnp.max(jnp.abs(out2 - ref2)))

    # 3) bf16 x / weights (how upstream should feed this on v6e/v7x to halve HBM
    #    bytes): bf16 MXU operands, f32 accumulation, f32 bias/sigmoid (v5e-safe).
    key, kx3 = jax.random.split(key)
    x3 = jax.random.normal(kx3, (256, input_size), jnp.float32).astype(jnp.bfloat16)
    params_bf16 = {k: (w.astype(jnp.bfloat16), b) for k, (w, b) in params.items()}
    out3 = jax.block_until_ready(fwd(x3, params_bf16))
    ref3 = ref_forward(x3, params_bf16)
    assert out3.shape == (256, 1), out3.shape
    assert jnp.allclose(out3, ref3, atol=2e-3, rtol=2e-3), float(jnp.max(jnp.abs(out3 - ref3)))

    print("KERNEL_OK")
</pallas_src>

<mosaic_0001>
module attributes {stable_mosaic.version = 11 : i64} {
  func.func @mlp_kernel(%arg0: i32, %arg1: memref<8x32xf32, #tpu.memory_space<vmem>>, %arg2: memref<20x32xf32, #tpu.memory_space<vmem>>, %arg3: memref<20x1xf32, #tpu.memory_space<vmem>>, %arg4: memref<20x20xf32, #tpu.memory_space<vmem>>, %arg5: memref<20x1xf32, #tpu.memory_space<vmem>>, %arg6: memref<20x20xf32, #tpu.memory_space<vmem>>, %arg7: memref<20x1xf32, #tpu.memory_space<vmem>>, %arg8: memref<1x20xf32, #tpu.memory_space<vmem>>, %arg9: memref<1x1xf32, #tpu.memory_space<vmem>>, %arg10: memref<1x8xf32, #tpu.memory_space<vmem>>) attributes {dimension_semantics = [#tpu.dimension_semantics<parallel>], iteration_bounds = array<i64: 1>, scalar_prefetch = 0 : i64, scratch_operands = 0 : i64, tpu.core_type = #tpu.core_type<tc>, window_params = [{transform_indices = @transform_0, window_bounds = array<i64: 8, 32>}, {pipeline_mode = #tpu.pipeline_mode<synchronous>, transform_indices = @transform_1, window_bounds = array<i64: 20, 32>}, {pipeline_mode = #tpu.pipeline_mode<synchronous>, transform_indices = @transform_2, window_bounds = array<i64: 20, 1>}, {pipeline_mode = #tpu.pipeline_mode<synchronous>, transform_indices = @transform_3, window_bounds = array<i64: 20, 20>}, {pipeline_mode = #tpu.pipeline_mode<synchronous>, transform_indices = @transform_4, window_bounds = array<i64: 20, 1>}, {pipeline_mode = #tpu.pipeline_mode<synchronous>, transform_indices = @transform_5, window_bounds = array<i64: 20, 20>}, {pipeline_mode = #tpu.pipeline_mode<synchronous>, transform_indices = @transform_6, window_bounds = array<i64: 20, 1>}, {pipeline_mode = #tpu.pipeline_mode<synchronous>, transform_indices = @transform_7, window_bounds = array<i64: 1, 20>}, {pipeline_mode = #tpu.pipeline_mode<synchronous>, transform_indices = @transform_8, window_bounds = array<i64: 1, 1>}, {transform_indices = @transform_9, window_bounds = array<i64: 1, 8>}]} {
    %c0 = arith.constant 0 : index
    %c0_0 = arith.constant 0 : index
    %0 = vector.load %arg1[%c0, %c0_0] : memref<8x32xf32, #tpu.memory_space<vmem>>, vector<8x32xf32>
    %c0_1 = arith.constant 0 : index
    %c0_2 = arith.constant 0 : index
    %1 = vector.load %arg2[%c0_1, %c0_2] : memref<20x32xf32, #tpu.memory_space<vmem>>, vector<20x32xf32>
    %cst = arith.constant dense<0.000000e+00> : vector<20x8xf32>
    %2 = tpu.matmul %1, %0, %cst {dimension_numbers = #tpu.dot_dimension_numbers<[1], [1], [0], [0], [0, 0, 1, 0], [], []>} : vector<20x32xf32>, vector<8x32xf32>, vector<20x8xf32> -> vector<20x8xf32>
    %c0_3 = arith.constant 0 : index
    %c0_4 = arith.constant 0 : index
    %3 = vector.load %arg3[%c0_3, %c0_4] : memref<20x1xf32, #tpu.memory_space<vmem>>, vector<20x1xf32>
    %4 = vector.broadcast %3 : vector<20x1xf32> to vector<20x8xf32>
    %5 = arith.addf %2, %4 : vector<20x8xf32>
    %6 = math.absf %5 : vector<20x8xf32>
    %cst_5 = arith.constant 0.000000e+00 : f32
    %7 = vector.broadcast %cst_5 : f32 to vector<20x8xf32>
    %8 = arith.subf %7, %6 : vector<20x8xf32>
    %9 = math.exp %8 : vector<20x8xf32>
    %cst_6 = arith.constant 0.000000e+00 : f32
    %10 = vector.broadcast %cst_6 : f32 to vector<20x8xf32>
    %11 = arith.cmpf oge, %5, %10 : vector<20x8xf32>
    %cst_7 = arith.constant 1.000000e+00 : f32
    %12 = vector.broadcast %cst_7 : f32 to vector<20x8xf32>
    %13 = arith.addf %12, %9 : vector<20x8xf32>
    %cst_8 = arith.constant 1.000000e+00 : f32
    %14 = vector.broadcast %cst_8 : f32 to vector<20x8xf32>
    %15 = arith.divf %14, %13 : vector<20x8xf32>
    %cst_9 = arith.constant 1.000000e+00 : f32
    %16 = vector.broadcast %cst_9 : f32 to vector<20x8xf32>
    %17 = arith.addf %16, %9 : vector<20x8xf32>
    %18 = arith.divf %9, %17 : vector<20x8xf32>
    %19 = arith.select %11, %15, %18 : vector<20x8xi1>, vector<20x8xf32>
    %c0_10 = arith.constant 0 : index
    %c0_11 = arith.constant 0 : index
    %20 = vector.load %arg4[%c0_10, %c0_11] : memref<20x20xf32, #tpu.memory_space<vmem>>, vector<20x20xf32>
    %cst_12 = arith.constant dense<0.000000e+00> : vector<20x8xf32>
    %21 = tpu.matmul %20, %19, %cst_12 {dimension_numbers = #tpu.dot_dimension_numbers<[1], [0], [0], [1], [0, 0, 1, 1], [], []>} : vector<20x20xf32>, vector<20x8xf32>, vector<20x8xf32> -> vector<20x8xf32>
    %c0_13 = arith.constant 0 : index
    %c0_14 = arith.constant 0 : index
    %22 = vector.load %arg5[%c0_13, %c0_14] : memref<20x1xf32, #tpu.memory_space<vmem>>, vector<20x1xf32>
    %23 = vector.broadcast %22 : vector<20x1xf32> to vector<20x8xf32>
    %24 = arith.addf %21, %23 : vector<20x8xf32>
    %25 = math.absf %24 : vector<20x8xf32>
    %cst_15 = arith.constant 0.000000e+00 : f32
    %26 = vector.broadcast %cst_15 : f32 to vector<20x8xf32>
    %27 = arith.subf %26, %25 : vector<20x8xf32>
    %28 = math.exp %27 : vector<20x8xf32>
    %cst_16 = arith.constant 0.000000e+00 : f32
    %29 = vector.broadcast %cst_16 : f32 to vector<20x8xf32>
    %30 = arith.cmpf oge, %24, %29 : vector<20x8xf32>
    %cst_17 = arith.constant 1.000000e+00 : f32
    %31 = vector.broadcast %cst_17 : f32 to vector<20x8xf32>
    %32 = arith.addf %31, %28 : vector<20x8xf32>
    %cst_18 = arith.constant 1.000000e+00 : f32
    %33 = vector.broadcast %cst_18 : f32 to vector<20x8xf32>
    %34 = arith.divf %33, %32 : vector<20x8xf32>
    %cst_19 = arith.constant 1.000000e+00 : f32
    %35 = vector.broadcast %cst_19 : f32 to vector<20x8xf32>
    %36 = arith.addf %35, %28 : vector<20x8xf32>
    %37 = arith.divf %28, %36 : vector<20x8xf32>
    %38 = arith.select %30, %34, %37 : vector<20x8xi1>, vector<20x8xf32>
    %c0_20 = arith.constant 0 : index
    %c0_21 = arith.constant 0 : index
    %39 = vector.load %arg6[%c0_20, %c0_21] : memref<20x20xf32, #tpu.memory_space<vmem>>, vector<20x20xf32>
    %cst_22 = arith.constant dense<0.000000e+00> : vector<20x8xf32>
    %40 = tpu.matmul %39, %38, %cst_22 {dimension_numbers = #tpu.dot_dimension_numbers<[1], [0], [0], [1], [0, 0, 1, 1], [], []>} : vector<20x20xf32>, vector<20x8xf32>, vector<20x8xf32> -> vector<20x8xf32>
    %c0_23 = arith.constant 0 : index
    %c0_24 = arith.constant 0 : index
    %41 = vector.load %arg7[%c0_23, %c0_24] : memref<20x1xf32, #tpu.memory_space<vmem>>, vector<20x1xf32>
    %42 = vector.broadcast %41 : vector<20x1xf32> to vector<20x8xf32>
    %43 = arith.addf %40, %42 : vector<20x8xf32>
    %44 = math.absf %43 : vector<20x8xf32>
    %cst_25 = arith.constant 0.000000e+00 : f32
    %45 = vector.broadcast %cst_25 : f32 to vector<20x8xf32>
    %46 = arith.subf %45, %44 : vector<20x8xf32>
    %47 = math.exp %46 : vector<20x8xf32>
    %cst_26 = arith.constant 0.000000e+00 : f32
    %48 = vector.broadcast %cst_26 : f32 to vector<20x8xf32>
    %49 = arith.cmpf oge, %43, %48 : vector<20x8xf32>
    %cst_27 = arith.constant 1.000000e+00 : f32
    %50 = vector.broadcast %cst_27 : f32 to vector<20x8xf32>
    %51 = arith.addf %50, %47 : vector<20x8xf32>
    %cst_28 = arith.constant 1.000000e+00 : f32
    %52 = vector.broadcast %cst_28 : f32 to vector<20x8xf32>
    %53 = arith.divf %52, %51 : vector<20x8xf32>
    %cst_29 = arith.constant 1.000000e+00 : f32
    %54 = vector.broadcast %cst_29 : f32 to vector<20x8xf32>
    %55 = arith.addf %54, %47 : vector<20x8xf32>
    %56 = arith.divf %47, %55 : vector<20x8xf32>
    %57 = arith.select %49, %53, %56 : vector<20x8xi1>, vector<20x8xf32>
    %c0_30 = arith.constant 0 : index
    %c0_31 = arith.constant 0 : index
    %58 = vector.load %arg8[%c0_30, %c0_31] : memref<1x20xf32, #tpu.memory_space<vmem>>, vector<1x20xf32>
    %cst_32 = arith.constant dense<0.000000e+00> : vector<1x8xf32>
    %59 = tpu.matmul %58, %57, %cst_32 {dimension_numbers = #tpu.dot_dimension_numbers<[1], [0], [0], [1], [0, 0, 1, 1], [], []>} : vector<1x20xf32>, vector<20x8xf32>, vector<1x8xf32> -> vector<1x8xf32>
    %c0_33 = arith.constant 0 : index
    %c0_34 = arith.constant 0 : index
    %60 = vector.load %arg9[%c0_33, %c0_34] : memref<1x1xf32, #tpu.memory_space<vmem>>, vector<1x1xf32>
    %61 = vector.broadcast %60 : vector<1x1xf32> to vector<1x8xf32>
    %62 = arith.addf %59, %61 : vector<1x8xf32>
    %c0_35 = arith.constant 0 : index
    %c0_36 = arith.constant 0 : index
    %63 = vector.load %arg10[%c0_35, %c0_36] : memref<1x8xf32, #tpu.memory_space<vmem>>, vector<1x8xf32>
    tpu.vector_store %arg10[%c0_35, %c0_36], %62 {strides = array<i32>} : memref<1x8xf32, #tpu.memory_space<vmem>>, vector<1x8xf32>,
    return
  }
  func.func @transform_0(%arg0: i32) -> (i32, i32) {
    %c0_i32 = arith.constant 0 : i32
    %c0_i32_0 = arith.constant 0 : i32
    return %arg0, %c0_i32 : i32, i32
  }
  func.func @transform_1(%arg0: i32) -> (i32, i32) {
    %c0_i32 = arith.constant 0 : i32
    %c0_i32_0 = arith.constant 0 : i32
    %c0_i32_1 = arith.constant 0 : i32
    return %c0_i32, %c0_i32_0 : i32, i32
  }
  func.func @transform_2(%arg0: i32) -> (i32, i32) {
    %c0_i32 = arith.constant 0 : i32
    %c0_i32_0 = arith.constant 0 : i32
    %c0_i32_1 = arith.constant 0 : i32
    return %c0_i32, %c0_i32_0 : i32, i32
  }
  func.func @transform_3(%arg0: i32) -> (i32, i32) {
    %c0_i32 = arith.constant 0 : i32
    %c0_i32_0 = arith.constant 0 : i32
    %c0_i32_1 = arith.constant 0 : i32
    return %c0_i32, %c0_i32_0 : i32, i32
  }
  func.func @transform_4(%arg0: i32) -> (i32, i32) {
    %c0_i32 = arith.constant 0 : i32
    %c0_i32_0 = arith.constant 0 : i32
    %c0_i32_1 = arith.constant 0 : i32
    return %c0_i32, %c0_i32_0 : i32, i32
  }
  func.func @transform_5(%arg0: i32) -> (i32, i32) {
    %c0_i32 = arith.constant 0 : i32
    %c0_i32_0 = arith.constant 0 : i32
    %c0_i32_1 = arith.constant 0 : i32
    return %c0_i32, %c0_i32_0 : i32, i32
  }
  func.func @transform_6(%arg0: i32) -> (i32, i32) {
    %c0_i32 = arith.constant 0 : i32
    %c0_i32_0 = arith.constant 0 : i32
    %c0_i32_1 = arith.constant 0 : i32
    return %c0_i32, %c0_i32_0 : i32, i32
  }
  func.func @transform_7(%arg0: i32) -> (i32, i32) {
    %c0_i32 = arith.constant 0 : i32
    %c0_i32_0 = arith.constant 0 : i32
    %c0_i32_1 = arith.constant 0 : i32
    return %c0_i32, %c0_i32_0 : i32, i32
  }
  func.func @transform_8(%arg0: i32) -> (i32, i32) {
    %c0_i32 = arith.constant 0 : i32
    %c0_i32_0 = arith.constant 0 : i32
    %c0_i32_1 = arith.constant 0 : i32
    return %c0_i32, %c0_i32_0 : i32, i32
  }
  func.func @transform_9(%arg0: i32) -> (i32, i32) {
    %c0_i32 = arith.constant 0 : i32
    %c0_i32_0 = arith.constant 0 : i32
    return %c0_i32, %arg0 : i32, i32
  }
}

</mosaic_0001>

<llo_original>
// kernel: neural_net_forward.1
$region0: #{neural_net_forward.1}
  #allocation0 [shape = 'u32[]', space=smem, size = 0x4, offset = 0x4, fixed_abs, tag = 'smem constant byte address 0x4 - core index']
  #allocation1 [shape = 'u32[144,128]{1,0:T(1,128)}', space=vmem, size = 0x12000, scoped, tag = 'internal scratch']
  #allocation2 [shape = 'f32[1,1]{1,0:T(1,128)S(1)}', space=vmem, size = 0x200, scoped, tag = 'scoped memory for neural_net_forward.1']
  %s0 = inlined_call_operand.hbm [shape: f32[8,32], index: 0, kind: input, shape index: {}]
  %s1 = inlined_call_operand.vmem [shape: f32[20,32], index: 1, kind: input, shape index: {}]
  %s2 = inlined_call_operand.vmem [shape: f32[20,1], index: 2, kind: input, shape index: {}]
  %s3 = inlined_call_operand.vmem [shape: f32[20,20], index: 3, kind: input, shape index: {}]
  %s4 = inlined_call_operand.vmem [shape: f32[20,1], index: 4, kind: input, shape index: {}]
  %s5 = inlined_call_operand.vmem [shape: f32[20,20], index: 5, kind: input, shape index: {}]
  %s6 = inlined_call_operand.vmem [shape: f32[20,1], index: 6, kind: input, shape index: {}]
  %s7 = inlined_call_operand.vmem [shape: f32[1,20], index: 7, kind: input, shape index: {}]
  %s8 = inlined_call_operand.<no memory space> [shape: f32[1,1], index: 8, kind: input, shape index: {}]
  %s9 = inlined_call_operand.hbm [shape: f32[1,8], index: 9, kind: output, shape index: {}]
  %s10 = sld [smem:[#allocation0]]
  $region50: #{neural_net_forward.1} parent=0
    _
  %s12 = ssub.s32 1, %s10
  %s13 = scalar_select 0, %s12, %s10
  %v14 = vstv %s8
  %15 = vst [vmem:[#allocation2] sm:$0x1] %v14
  $region1: #{neural_net_forward.1} parent=0
    #allocation3 [shape = 'u8[4096]{0}', space=vmem, size = 0x1000, scoped, tag = 'input window, operand 0, single buffered']
    #allocation4 [shape = 's32[1]{0}', space=sflag, size = 0x4, scoped, tag = 'scoped memory for neural_net_forward.1']
    #allocation5 [shape = 's32[1]{0}', space=sflag, size = 0x4, scoped, tag = 'scoped memory for neural_net_forward.1']
    #allocation6 [shape = 'u8[512]{0}', space=vmem, size = 0x400, scoped, tag = 'output window, operand 0, single buffered']
    %16 = vsyncpa [#allocation4], 0
    %17 = vsyncpa [#allocation5], 0
    // Predicated region
    $region2: #{neural_net_forward.1} parent=1 // pred_check
      _
    $region3: #{neural_net_forward.1} parent=1 // pred_check_branch
      %19 = sbr.rel (0) target = $region5
    $region4: #{neural_net_forward.1} parent=1 // pred_region
      %s21 = ssub.s32 128, 128
      %22 = vsyncadd [#allocation4], %s21
      %s24 = sshll.u32 [#allocation3], 4
      %s25 = int_to_ptr.vmem [resolvable:$true] %s24
      %27 = dma.hbm_to_vmem [thread:$0]  %s0, 128, %s25, [#allocation4]
    $region5: #{neural_net_forward.1} parent=1 // pred_fallthru
      _
    // Predicated region
    $region6: #{neural_net_forward.1} parent=1 // pred_check
      _
    $region7: #{neural_net_forward.1} parent=1 // pred_check_branch
      %29 = sbr.rel (0) target = $region9
    $region8: #{neural_net_forward.1} parent=1 // pred_region
      _
    $region9: #{neural_net_forward.1} parent=1 // pred_fallthru
      _
    // Predicated region
    $region10: #{neural_net_forward.1} parent=1 // pred_check
      _
    $region11: #{neural_net_forward.1} parent=1 // pred_check_branch
      %31 = sbr.rel (0) target = $region13
    $region12: #{neural_net_forward.1} parent=1 // pred_region
      _
    $region13: #{neural_net_forward.1} parent=1 // pred_fallthru
      _
    // Predicated region
    $region14: #{neural_net_forward.1} parent=1 // pred_check
      _
    $region15: #{neural_net_forward.1} parent=1 // pred_check_branch
      %33 = sbr.rel (0) target = $region17
    $region16: #{neural_net_forward.1} parent=1 // pred_region
      _
    $region17: #{neural_net_forward.1} parent=1 // pred_fallthru
      _
    // Predicated region
    $region18: #{neural_net_forward.1} parent=1 // pred_check
      _
    $region19: #{neural_net_forward.1} parent=1 // pred_check_branch
      %35 = sbr.rel (0) target = $region21
    $region20: #{neural_net_forward.1} parent=1 // pred_region
      _
    $region21: #{neural_net_forward.1} parent=1 // pred_fallthru
      _
    // Predicated region
    $region22: #{neural_net_forward.1} parent=1 // pred_check
      _
    $region23: #{neural_net_forward.1} parent=1 // pred_check_branch
      %37 = sbr.rel (0) target = $region25
    $region24: #{neural_net_forward.1} parent=1 // pred_region
      _
    $region25: #{neural_net_forward.1} parent=1 // pred_fallthru
      _
    // Predicated region
    $region26: #{neural_net_forward.1} parent=1 // pred_check
      _
    $region27: #{neural_net_forward.1} parent=1 // pred_check_branch
      %39 = sbr.rel (0) target = $region29
    $region28: #{neural_net_forward.1} parent=1 // pred_region
      _
    $region29: #{neural_net_forward.1} parent=1 // pred_fallthru
      _
    // Predicated region
    $region30: #{neural_net_forward.1} parent=1 // pred_check
      _
    $region31: #{neural_net_forward.1} parent=1 // pred_check_branch
      %41 = sbr.rel (0) target = $region33
    $region32: #{neural_net_forward.1} parent=1 // pred_region
      _
    $region33: #{neural_net_forward.1} parent=1 // pred_fallthru
      _
    // Predicated region
    $region34: #{neural_net_forward.1} parent=1 // pred_check
      _
    $region35: #{neural_net_forward.1} parent=1 // pred_check_branch
      %43 = sbr.rel (0) target = $region37
    $region36: #{neural_net_forward.1} parent=1 // pred_region
      _
    $region37: #{neural_net_forward.1} parent=1 // pred_fallthru
      _
    // Predicated region
    $region38: #{neural_net_forward.1} parent=1 // pred_check
      _
    $region39: #{neural_net_forward.1} parent=1 // pred_check_branch
      %45 = sbr.rel (0) target = $region41
    $region40: #{neural_net_forward.1} parent=1 // pred_region
      %46 = dma.done [#allocation4], 128
    $region41: #{neural_net_forward.1} parent=1 // pred_fallthru
      _
    %v47 = vld [vmem:[#allocation3] sm:$0xff]
    %v48 = vld [vmem:[%s1] sm:$0xff]
    %v49 = vld [vmem:[%s1 + $0x8] sm:$0xff]
    %v50 = vld [vmem:[%s1 + $0x10] sm:$0xf]
    %v51 = vld [vmem:[%s2] sm:$0xff]
    %v52 = vld [vmem:[%s2 + $0x8] sm:$0xff]
    %v53 = vld [vmem:[%s2 + $0x10] sm:$0xf]
    %55 = vset.pattern.permute.xlu0 0
    %56 = vperm.xlu0 %55, %v51
    %v57 = vpop.permute.xlu0 %56
    %60 = vset.pattern.permute.xlu0 0
    %61 = vperm.xlu0 %60, %v52
    %v62 = vpop.permute.xlu0 %61
    %65 = vset.pattern.permute.xlu0 0
    %66 = vperm.xlu0 %65, %v53
    %v67 = vpop.permute.xlu0 %66
    %vm69 = vcmask 261120
    %v71 = vsel %vm69, %v48, 0
    %v74 = vsel %vm69, %v49, 0
    %v77 = vsel %vm69, %v50, 0
    %v80 = vsel %vm69, %v47, 0
    %82 = vmatprep.subr.mxu0 0.0
    %83 = vmatpush1.xpose.msra.mxu0 %v80
    %84 = vmatprep.subr.mxu0 0.0
    %85 = vmatpush1.xpose.msra.mxu0 0.0
    %86 = vmatprep.subr.mxu0 0.0
    %87 = vmatpush1.xpose.msra.mxu0 0.0
    %88 = vmatprep.subr.mxu0 0.0
    %89 = vmatpush1.xpose.msra.mxu0 0.0
    %90 = vmatprep.subr.mxu0 0.0
    %91 = vmatpush1.xpose.msra.mxu0 0.0
    %92 = vmatprep.subr.mxu0 0.0
    %93 = vmatpush1.xpose.msra.mxu0 0.0
    %94 = vmatprep.subr.mxu0 0.0
    %95 = vmatpush1.xpose.msra.mxu0 0.0
    %96 = vmatprep.subr.mxu0 0.0
    %97 = vmatpush1.xpose.msra.mxu0 0.0
    %98 = vmatprep.subr.mxu0 0.0
    %99 = vmatpush1.xpose.msra.mxu0 0.0
    %100 = vmatprep.subr.mxu0 0.0
    %101 = vmatpush1.xpose.msra.mxu0 0.0
    %102 = vmatprep.subr.mxu0 0.0
    %103 = vmatpush1.xpose.msra.mxu0 0.0
    %104 = vmatprep.subr.mxu0 0.0
    %105 = vmatpush1.xpose.msra.mxu0 0.0
    %106 = vmatprep.subr.mxu0 0.0
    %107 = vmatpush1.xpose.msra.mxu0 0.0
    %108 = vmatprep.subr.mxu0 0.0
    %109 = vmatpush1.xpose.msra.mxu0 0.0
    %110 = vmatprep.subr.mxu0 0.0
    %111 = vmatpush1.xpose.msra.mxu0 0.0
    %112 = vmatprep.subr.mxu0 0.0
    %113 = vmatpush1.xpose.msra.mxu0 0.0
    %114 = vmatprep.subr.mxu0 0.0
    %115 = vmatpush1.xpose.msra.mxu0 0.0
    %116 = vmatprep.subr.mxu0 0.0
    %117 = vmatpush1.xpose.msra.mxu0 0.0
    %118 = vmatprep.subr.mxu0 0.0
    %119 = vmatpush1.xpose.msra.mxu0 0.0
    %120 = vmatprep.subr.mxu0 0.0
    %121 = vmatpush1.xpose.msra.mxu0 0.0
    %122 = vmatprep.subr.mxu0 0.0
    %123 = vmatpush1.xpose.msra.mxu0 0.0
    %124 = vmatprep.subr.mxu0 0.0
    %125 = vmatpush1.xpose.msra.mxu0 0.0
    %126 = vmatprep.subr.mxu0 0.0
    %127 = vmatpush1.xpose.msra.mxu0 0.0
    %128 = vmatprep.subr.mxu0 0.0
    %129 = vmatpush1.xpose.msra.mxu0 0.0
    %130 = vmatprep.subr.mxu0 0.0
    %131 = vmatpush1.xpose.msra.mxu0 0.0
    %132 = vmatprep.subr.mxu0 0.0
    %133 = vmatpush1.xpose.msra.mxu0 0.0
    %134 = vmatprep.subr.mxu0 0.0
    %135 = vmatpush1.xpose.msra.mxu0 0.0
    %136 = vmatprep.subr.mxu0 0.0
    %137 = vmatpush1.xpose.msra.mxu0 0.0
    %138 = vmatprep.subr.mxu0 0.0
    %139 = vmatpush1.xpose.msra.mxu0 0.0
    %140 = vmatprep.subr.mxu0 0.0
    %141 = vmatpush1.xpose.msra.mxu0 0.0
    %142 = vmatprep.subr.mxu0 0.0
    %143 = vmatpush1.xpose.msra.mxu0 0.0
    %144 = vmatprep.subr.mxu0 0.0
    %145 = vmatpush1.xpose.msra.mxu0 0.0
    %146 = vmatprep.mubr.f32.mxu0 0.0
    %147 = vmatmul.mubr.f32.gmra.mrb[0].mxu0 %v71
    %v148 = vpop.f32.mrb[0].mxu0
    %v149 = vadd.f32 %v57, %v148
    %v150 = vpop.f32.mrb[0].mxu0
    %151 = vmatprep.mubr.f32.mxu0 0.0
    %152 = vmatmul.mubr.f32.gmra.mrb[0].mxu0 %v74
    %v153 = vpop.f32.mrb[0].mxu0
    %v154 = vadd.f32 %v62, %v153
    %v155 = vpop.f32.mrb[0].mxu0
    %156 = vmatprep.mubr.f32.mxu0 0.0
    %157 = vmatmul.mubr.f32.gmra.mrb[0].mxu0 %v77
    %v158 = vpop.f32.mrb[0].mxu0
    %v159 = vadd.f32 %v67, %v158
    %v160 = vpop.f32.mrb[0].mxu0
    %161 = vdwg.mxu0
    %v162 = vand.u32 2147483647, %v149
    %v163 = vand.u32 2147483647, %v154
    %v164 = vand.u32 2147483647, %v159
    %v165 = vsub.f32 0.0, %v162
    %v166 = vsub.f32 0.0, %v163
    %v167 = vsub.f32 0.0, %v164
    %v168 = vmul.f32 %v165, 1.442695
    %v169 = vpow.pop %v168
    %v170 = vmul.f32 %v166, 1.442695
    %v171 = vpow.pop %v170
    %v172 = vmul.f32 %v167, 1.442695
    %v173 = vpow.pop %v172
    %vm174 = vcmp.ge.f32.partialorder %v149, 0.0
    %vm175 = vcmp.ge.f32.partialorder %v154, 0.0
    %vm176 = vcmp.ge.f32.partialorder %v159, 0.0
    %v177 = vadd.f32 %v169, 1.0
    %v178 = vadd.f32 %v171, 1.0
    %v179 = vadd.f32 %v173, 1.0
    %v180 = vrcp.pop %v177
    %v181 = vmul.f32 1.0, %v180
    %v182 = vrcp.pop %v178
    %v183 = vmul.f32 1.0, %v182
    %v184 = vrcp.pop %v179
    %v185 = vmul.f32 1.0, %v184
    %v186 = vmul.f32 %v169, %v180
    %v187 = vmul.f32 %v171, %v182
    %v188 = vmul.f32 %v173, %v184
    %v189 = vsel %vm174, %v181, %v186
    %v190 = vsel %vm175, %v183, %v187
    %v191 = vsel %vm176, %v185, %v188
    %v192 = vld [vmem:[%s3] sm:$0xff]
    %v193 = vld [vmem:[%s3 + $0x8] sm:$0xff]
    %v194 = vld [vmem:[%s3 + $0x10] sm:$0xf]
    %v195 = vld [vmem:[%s4] sm:$0xff]
    %v196 = vld [vmem:[%s4 + $0x8] sm:$0xff]
    %v197 = vld [vmem:[%s4 + $0x10] sm:$0xf]
    %199 = vset.pattern.permute.xlu0 0
    %200 = vperm.xlu0 %199, %v195
    %v201 = vpop.permute.xlu0 %200
    %204 = vset.pattern.permute.xlu0 0
    %205 = vperm.xlu0 %204, %v196
    %v206 = vpop.permute.xlu0 %205
    %209 = vset.pattern.permute.xlu0 0
    %210 = vperm.xlu0 %209, %v197
    %v211 = vpop.permute.xlu0 %210
    %vm213 = vcmask 162816
    %v215 = vsel %vm213, %v192, 0
    %v218 = vsel %vm213, %v193, 0
    %v221 = vsel %vm213, %v194, 0
    %vm223 = vcmask 1043456
    %v225 = vsel %vm223, %v191, 0
    %227 = vmatprep.subr.mxu0 0.0
    %228 = vmatpush1.msra.mxu0 %v189
    %229 = vmatprep.subr.mxu0 0.0
    %230 = vmatpush1.msra.mxu0 %v190
    %231 = vmatprep.subr.mxu0 0.0
    %232 = vmatpush1.msra.mxu0 %v225
    %233 = vmatprep.subr.mxu0 0.0
    %234 = vmatpush1.msra.mxu0 0.0
    %235 = vmatprep.subr.mxu0 0.0
    %236 = vmatpush1.msra.mxu0 0.0
    %237 = vmatprep.subr.mxu0 0.0
    %238 = vmatpush1.msra.mxu0 0.0
    %239 = vmatprep.subr.mxu0 0.0
    %240 = vmatpush1.msra.mxu0 0.0
    %241 = vmatprep.subr.mxu0 0.0
    %242 = vmatpush1.msra.mxu0 0.0
    %243 = vmatprep.subr.mxu0 0.0
    %244 = vmatpush1.msra.mxu0 0.0
    %245 = vmatprep.subr.mxu0 0.0
    %246 = vmatpush1.msra.mxu0 0.0
    %247 = vmatprep.subr.mxu0 0.0
    %248 = vmatpush1.msra.mxu0 0.0
    %249 = vmatprep.subr.mxu0 0.0
    %250 = vmatpush1.msra.mxu0 0.0
    %251 = vmatprep.subr.mxu0 0.0
    %252 = vmatpush1.msra.mxu0 0.0
    %253 = vmatprep.subr.mxu0 0.0
    %254 = vmatpush1.msra.mxu0 0.0
    %255 = vmatprep.subr.mxu0 0.0
    %256 = vmatpush1.msra.mxu0 0.0
    %257 = vmatprep.subr.mxu0 0.0
    %258 = vmatpush1.msra.mxu0 0.0
    %259 = vmatprep.subr.mxu0 0.0
    %260 = vmatpush1.msra.mxu0 0.0
    %261 = vmatprep.subr.mxu0 0.0
    %262 = vmatpush1.msra.mxu0 0.0
    %263 = vmatprep.subr.mxu0 0.0
    %264 = vmatpush1.msra.mxu0 0.0
    %265 = vmatprep.subr.mxu0 0.0
    %266 = vmatpush1.msra.mxu0 0.0
    %267 = vmatprep.subr.mxu0 0.0
    %268 = vmatpush1.msra.mxu0 0.0
    %269 = vmatprep.subr.mxu0 0.0
    %270 = vmatpush1.msra.mxu0 0.0
    %271 = vmatprep.subr.mxu0 0.0
    %272 = vmatpush1.msra.mxu0 0.0
    %273 = vmatprep.subr.mxu0 0.0
    %274 = vmatpush1.msra.mxu0 0.0
    %275 = vmatprep.subr.mxu0 0.0
    %276 = vmatpush1.msra.mxu0 0.0
    %277 = vmatprep.subr.mxu0 0.0
    %278 = vmatpush1.msra.mxu0 0.0
    %279 = vmatprep.subr.mxu0 0.0
    %280 = vmatpush1.msra.mxu0 0.0
    %281 = vmatprep.subr.mxu0 0.0
    %282 = vmatpush1.msra.mxu0 0.0
    %283 = vmatprep.subr.mxu0 0.0
    %284 = vmatpush1.msra.mxu0 0.0
    %285 = vmatprep.subr.mxu0 0.0
    %286 = vmatpush1.msra.mxu0 0.0
    %287 = vmatprep.subr.mxu0 0.0
    %288 = vmatpush1.msra.mxu0 0.0
    %289 = vmatprep.subr.mxu0 0.0
    %290 = vmatpush1.msra.mxu0 0.0
    %291 = vmatprep.mubr.f32.mxu0 0.0
    %292 = vmatmul.mubr.f32.gmra.mrb[0].mxu0 %v215
    %v293 = vpop.f32.mrb[0].mxu0
    %v294 = vadd.f32 %v201, %v293
    %v295 = vpop.f32.mrb[0].mxu0
    %296 = vmatprep.mubr.f32.mxu0 0.0
    %297 = vmatmul.mubr.f32.gmra.mrb[0].mxu0 %v218
    %v298 = vpop.f32.mrb[0].mxu0
    %v299 = vadd.f32 %v206, %v298
    %v300 = vpop.f32.mrb[0].mxu0
    %301 = vmatprep.mubr.f32.mxu0 0.0
    %302 = vmatmul.mubr.f32.gmra.mrb[0].mxu0 %v221
    %v303 = vpop.f32.mrb[0].mxu0
    %v304 = vadd.f32 %v211, %v303
    %v305 = vpop.f32.mrb[0].mxu0
    %306 = vdwg.mxu0
    %v307 = vand.u32 2147483647, %v294
    %v308 = vand.u32 2147483647, %v299
    %v309 = vand.u32 2147483647, %v304
    %v310 = vsub.f32 0.0, %v307
    %v311 = vsub.f32 0.0, %v308
    %v312 = vsub.f32 0.0, %v309
    %v313 = vmul.f32 %v310, 1.442695
    %v314 = vpow.pop %v313
    %v315 = vmul.f32 %v311, 1.442695
    %v316 = vpow.pop %v315
    %v317 = vmul.f32 %v312, 1.442695
    %v318 = vpow.pop %v317
    %vm319 = vcmp.ge.f32.partialorder %v294, 0.0
    %vm320 = vcmp.ge.f32.partialorder %v299, 0.0
    %vm321 = vcmp.ge.f32.partialorder %v304, 0.0
    %v322 = vadd.f32 %v314, 1.0
    %v323 = vadd.f32 %v316, 1.0
    %v324 = vadd.f32 %v318, 1.0
    %v325 = vrcp.pop %v322
    %v326 = vmul.f32 1.0, %v325
    %v327 = vrcp.pop %v323
    %v328 = vmul.f32 1.0, %v327
    %v329 = vrcp.pop %v324
    %v330 = vmul.f32 1.0, %v329
    %v331 = vmul.f32 %v314, %v325
    %v332 = vmul.f32 %v316, %v327
    %v333 = vmul.f32 %v318, %v329
    %v334 = vsel %vm319, %v326, %v331
    %v335 = vsel %vm320, %v328, %v332
    %v336 = vsel %vm321, %v330, %v333
    %v337 = vld [vmem:[%s5] sm:$0xff]
    %v338 = vld [vmem:[%s5 + $0x8] sm:$0xff]
    %v339 = vld [vmem:[%s5 + $0x10] sm:$0xf]
    %v340 = vld [vmem:[%s6] sm:$0xff]
    %v341 = vld [vmem:[%s6 + $0x8] sm:$0xff]
    %v342 = vld [vmem:[%s6 + $0x10] sm:$0xf]
    %344 = vset.pattern.permute.xlu0 0
    %345 = vperm.xlu0 %344, %v340
    %v346 = vpop.permute.xlu0 %345
    %349 = vset.pattern.permute.xlu0 0
    %350 = vperm.xlu0 %349, %v341
    %v351 = vpop.permute.xlu0 %350
    %354 = vset.pattern.permute.xlu0 0
    %355 = vperm.xlu0 %354, %v342
    %v356 = vpop.permute.xlu0 %355
    %v359 = vsel %vm213, %v337, 0
    %v362 = vsel %vm213, %v338, 0
    %v365 = vsel %vm213, %v339, 0
    %v368 = vsel %vm223, %v336, 0
    %370 = vmatprep.subr.mxu0 0.0
    %371 = vmatpush1.msra.mxu0 %v334
    %372 = vmatprep.subr.mxu0 0.0
    %373 = vmatpush1.msra.mxu0 %v335
    %374 = vmatprep.subr.mxu0 0.0
    %375 = vmatpush1.msra.mxu0 %v368
    %376 = vmatprep.subr.mxu0 0.0
    %377 = vmatpush1.msra.mxu0 0.0
    %378 = vmatprep.subr.mxu0 0.0
    %379 = vmatpush1.msra.mxu0 0.0
    %380 = vmatprep.subr.mxu0 0.0
    %381 = vmatpush1.msra.mxu0 0.0
    %382 = vmatprep.subr.mxu0 0.0
    %383 = vmatpush1.msra.mxu0 0.0
    %384 = vmatprep.subr.mxu0 0.0
    %385 = vmatpush1.msra.mxu0 0.0
    %386 = vmatprep.subr.mxu0 0.0
    %387 = vmatpush1.msra.mxu0 0.0
    %388 = vmatprep.subr.mxu0 0.0
    %389 = vmatpush1.msra.mxu0 0.0
    %390 = vmatprep.subr.mxu0 0.0
    %391 = vmatpush1.msra.mxu0 0.0
    %392 = vmatprep.subr.mxu0 0.0
    %393 = vmatpush1.msra.mxu0 0.0
    %394 = vmatprep.subr.mxu0 0.0
    %395 = vmatpush1.msra.mxu0 0.0
    %396 = vmatprep.subr.mxu0 0.0
    %397 = vmatpush1.msra.mxu0 0.0
    %398 = vmatprep.subr.mxu0 0.0
    %399 = vmatpush1.msra.mxu0 0.0
    %400 = vmatprep.subr.mxu0 0.0
    %401 = vmatpush1.msra.mxu0 0.0
    %402 = vmatprep.subr.mxu0 0.0
    %403 = vmatpush1.msra.mxu0 0.0
    %404 = vmatprep.subr.mxu0 0.0
    %405 = vmatpush1.msra.mxu0 0.0
    %406 = vmatprep.subr.mxu0 0.0
    %407 = vmatpush1.msra.mxu0 0.0
    %408 = vmatprep.subr.mxu0 0.0
    %409 = vmatpush1.msra.mxu0 0.0
    %410 = vmatprep.subr.mxu0 0.0
    %411 = vmatpush1.msra.mxu0 0.0
    %412 = vmatprep.subr.mxu0 0.0
    %413 = vmatpush1.msra.mxu0 0.0
    %414 = vmatprep.subr.mxu0 0.0
    %415 = vmatpush1.msra.mxu0 0.0
    %416 = vmatprep.subr.mxu0 0.0
    %417 = vmatpush1.msra.mxu0 0.0
    %418 = vmatprep.subr.mxu0 0.0
    %419 = vmatpush1.msra.mxu0 0.0
    %420 = vmatprep.subr.mxu0 0.0
    %421 = vmatpush1.msra.mxu0 0.0
    %422 = vmatprep.subr.mxu0 0.0
    %423 = vmatpush1.msra.mxu0 0.0
    %424 = vmatprep.subr.mxu0 0.0
    %425 = vmatpush1.msra.mxu0 0.0
    %426 = vmatprep.subr.mxu0 0.0
    %427 = vmatpush1.msra.mxu0 0.0
    %428 = vmatprep.subr.mxu0 0.0
    %429 = vmatpush1.msra.mxu0 0.0
    %430 = vmatprep.subr.mxu0 0.0
    %431 = vmatpush1.msra.mxu0 0.0
    %432 = vmatprep.subr.mxu0 0.0
    %433 = vmatpush1.msra.mxu0 0.0
    %434 = vmatprep.mubr.f32.mxu0 0.0
    %435 = vmatmul.mubr.f32.gmra.mrb[0].mxu0 %v359
    %v436 = vpop.f32.mrb[0].mxu0
    %v437 = vadd.f32 %v346, %v436
    %v438 = vpop.f32.mrb[0].mxu0
    %439 = vmatprep.mubr.f32.mxu0 0.0
    %440 = vmatmul.mubr.f32.gmra.mrb[0].mxu0 %v362
    %v441 = vpop.f32.mrb[0].mxu0
    %v442 = vadd.f32 %v351, %v441
    %v443 = vpop.f32.mrb[0].mxu0
    %444 = vmatprep.mubr.f32.mxu0 0.0
    %445 = vmatmul.mubr.f32.gmra.mrb[0].mxu0 %v365
    %v446 = vpop.f32.mrb[0].mxu0
    %v447 = vadd.f32 %v356, %v446
    %v448 = vpop.f32.mrb[0].mxu0
    %449 = vdwg.mxu0
    %v450 = vand.u32 2147483647, %v437
    %v451 = vand.u32 2147483647, %v442
    %v452 = vand.u32 2147483647, %v447
    %v453 = vsub.f32 0.0, %v450
    %v454 = vsub.f32 0.0, %v451
    %v455 = vsub.f32 0.0, %v452
    %v456 = vmul.f32 %v453, 1.442695
    %v457 = vpow.pop %v456
    %v458 = vmul.f32 %v454, 1.442695
    %v459 = vpow.pop %v458
    %v460 = vmul.f32 %v455, 1.442695
    %v461 = vpow.pop %v460
    %vm462 = vcmp.ge.f32.partialorder %v437, 0.0
    %vm463 = vcmp.ge.f32.partialorder %v442, 0.0
    %vm464 = vcmp.ge.f32.partialorder %v447, 0.0
    %v465 = vadd.f32 %v457, 1.0
    %v466 = vadd.f32 %v459, 1.0
    %v467 = vadd.f32 %v461, 1.0
    %v468 = vrcp.pop %v465
    %v469 = vmul.f32 1.0, %v468
    %v470 = vrcp.pop %v466
    %v471 = vmul.f32 1.0, %v470
    %v472 = vrcp.pop %v467
    %v473 = vmul.f32 1.0, %v472
    %v474 = vmul.f32 %v457, %v468
    %v475 = vmul.f32 %v459, %v470
    %v476 = vmul.f32 %v461, %v472
    %v477 = vsel %vm462, %v469, %v474
    %v478 = vsel %vm463, %v471, %v475
    %v479 = vsel %vm464, %v473, %v476
    %v480 = vld [vmem:[%s7] sm:$0x1]
    %v481 = vld [vmem:[#allocation2] sm:$0x1]
    %483 = vset.pattern.permute.xlu0 0
    %484 = vperm.xlu0 %483, %v481
    %v485 = vpop.permute.xlu0 %484
    %v487 = vlaneseq
    %v488 = vshrl.u32 %v487, 7
    %v489 = vsub.s32 0, %v488
    %v490 = vrot.slane %v485, %v489
    %v492 = vsel %vm213, %v480, 0
    %v495 = vsel %vm223, %v479, 0
    %497 = vmatprep.subr.mxu0 0.0
    %498 = vmatpush1.msra.mxu0 %v477
    %499 = vmatprep.subr.mxu0 0.0
    %500 = vmatpush1.msra.mxu0 %v478
    %501 = vmatprep.subr.mxu0 0.0
    %502 = vmatpush1.msra.mxu0 %v495
    %503 = vmatprep.subr.mxu0 0.0
    %504 = vmatpush1.msra.mxu0 0.0
    %505 = vmatprep.subr.mxu0 0.0
    %506 = vmatpush1.msra.mxu0 0.0
    %507 = vmatprep.subr.mxu0 0.0
    %508 = vmatpush1.msra.mxu0 0.0
    %509 = vmatprep.subr.mxu0 0.0
    %510 = vmatpush1.msra.mxu0 0.0
    %511 = vmatprep.subr.mxu0 0.0
    %512 = vmatpush1.msra.mxu0 0.0
    %513 = vmatprep.subr.mxu0 0.0
    %514 = vmatpush1.msra.mxu0 0.0
    %515 = vmatprep.subr.mxu0 0.0
    %516 = vmatpush1.msra.mxu0 0.0
    %517 = vmatprep.subr.mxu0 0.0
    %518 = vmatpush1.msra.mxu0 0.0
    %519 = vmatprep.subr.mxu0 0.0
    %520 = vmatpush1.msra.mxu0 0.0
    %521 = vmatprep.subr.mxu0 0.0
    %522 = vmatpush1.msra.mxu0 0.0
    %523 = vmatprep.subr.mxu0 0.0
    %524 = vmatpush1.msra.mxu0 0.0
    %525 = vmatprep.subr.mxu0 0.0
    %526 = vmatpush1.msra.mxu0 0.0
    %527 = vmatprep.subr.mxu0 0.0
    %528 = vmatpush1.msra.mxu0 0.0
    %529 = vmatprep.subr.mxu0 0.0
    %530 = vmatpush1.msra.mxu0 0.0
    %531 = vmatprep.subr.mxu0 0.0
    %532 = vmatpush1.msra.mxu0 0.0
    %533 = vmatprep.subr.mxu0 0.0
    %534 = vmatpush1.msra.mxu0 0.0
    %535 = vmatprep.subr.mxu0 0.0
    %536 = vmatpush1.msra.mxu0 0.0
    %537 = vmatprep.subr.mxu0 0.0
    %538 = vmatpush1.msra.mxu0 0.0
    %539 = vmatprep.subr.mxu0 0.0
    %540 = vmatpush1.msra.mxu0 0.0
    %541 = vmatprep.subr.mxu0 0.0
    %542 = vmatpush1.msra.mxu0 0.0
    %543 = vmatprep.subr.mxu0 0.0
    %544 = vmatpush1.msra.mxu0 0.0
    %545 = vmatprep.subr.mxu0 0.0
    %546 = vmatpush1.msra.mxu0 0.0
    %547 = vmatprep.subr.mxu0 0.0
    %548 = vmatpush1.msra.mxu0 0.0
    %549 = vmatprep.subr.mxu0 0.0
    %550 = vmatpush1.msra.mxu0 0.0
    %551 = vmatprep.subr.mxu0 0.0
    %552 = vmatpush1.msra.mxu0 0.0
    %553 = vmatprep.subr.mxu0 0.0
    %554 = vmatpush1.msra.mxu0 0.0
    %555 = vmatprep.subr.mxu0 0.0
    %556 = vmatpush1.msra.mxu0 0.0
    %557 = vmatprep.subr.mxu0 0.0
    %558 = vmatpush1.msra.mxu0 0.0
    %559 = vmatprep.subr.mxu0 0.0
    %560 = vmatpush1.msra.mxu0 0.0
    %561 = vmatprep.mubr.f32.mxu0 0.0
    %562 = vmatmul.mubr.f32.gmra.mrb[0].mxu0 %v492
    %v563 = vpop.f32.mrb[0].mxu0
    %v564 = vadd.f32 %v490, %v563
    %v565 = vpop.f32.mrb[0].mxu0
    %566 = vdwg.mxu0
    %vm567 = vcmask 57344
    %568 = vst.msk [vmem:[#allocation6] sm:$0x1] %vm567, %v564
    // Predicated region
    $region42: #{neural_net_forward.1} parent=1 // pred_check
      _
    $region43: #{neural_net_forward.1} parent=1 // pred_check_branch
      %570 = sbr.rel (0) target = $region45
    $region44: #{neural_net_forward.1} parent=1 // pred_region
      %s572 = ssub.s32 16, 16
      %573 = vsyncadd [#allocation5], %s572
      %s575 = sshll.u32 [#allocation6], 4
      %s576 = int_to_ptr.vmem [resolvable:$true] %s575
      %578 = dma.vmem_to_hbm [thread:$0]  %s576, 16, %s9, [#allocation5]
    $region45: #{neural_net_forward.1} parent=1 // pred_fallthru
      _
    // Predicated region
    $region46: #{neural_net_forward.1} parent=1 // pred_check
      _
    $region47: #{neural_net_forward.1} parent=1 // pred_check_branch
      %580 = sbr.rel (0) target = $region49
    $region48: #{neural_net_forward.1} parent=1 // pred_region
      %581 = dma.done [#allocation5], 16
    $region49: #{neural_net_forward.1} parent=1 // pred_fallthru
      _
    %582 = vsyncpa [#allocation4], 1
    %583 = vsyncpa [#allocation5], 1

</llo_original>
